<compile_context>
chip_gen: v7x
topology: tpu7x:2x2x1
jax: 0.10.0
libtpu: 0.0.40
codegen_flags: <defaults>
</compile_context>

<pallas_src>
import jax
import jax.numpy as jnp
from jax.experimental import pallas as pl
from jax.experimental.pallas import tpu as pltpu

_LN_EPS = 1e-5  # PyTorch LayerNorm default


def _cross_pooler_kernel(x_ref, g_ref, beta_ref, w_ref, bias_ref, o_ref):
    # x_ref: (block_n, D) -- token-0 hidden states for this batch tile.
    x = x_ref[...].astype(jnp.float32)

    # ---- LayerNorm over the feature axis (f32 statistics) ----
    mean = jnp.mean(x, axis=-1, keepdims=True)
    var = jnp.mean(jnp.square(x - mean), axis=-1, keepdims=True)
    xn = (x - mean) * jax.lax.rsqrt(var + _LN_EPS)
    xn = xn * g_ref[...].astype(jnp.float32) + beta_ref[...].astype(jnp.float32)

    # ---- dense: contraction-major weight (D_in, D_out), f32 MXU accumulation ----
    y = jnp.dot(xn.astype(w_ref.dtype), w_ref[...],
                preferred_element_type=jnp.float32)
    y = y + bias_ref[...].astype(jnp.float32)

    # ---- QuickGELU: y * sigmoid(1.702 * y)  (sigmoid -> EUP, mul -> VPU) ----
    y = y * jax.nn.sigmoid(1.702 * y)

    o_ref[...] = y.astype(o_ref.dtype)


def cross_pooler(hidden_states, hidden_mask, ln_gamma, ln_beta, dense_w, dense_b,
                 *, block_n=None):
    """Pallas CrossPooler forward.

    hidden_states: (N, L, D).  `hidden_mask` is accepted for API parity but the
    PyTorch module's forward never uses it.  Returns pooled_output (N, D).
    """
    del hidden_mask  # unused by CrossPooler.forward (matches the PyTorch module)
    N, L, D = hidden_states.shape

    # Only token 0 survives the pooling; LayerNorm is per-token, so slicing
    # first is exactly equivalent to ln_pool(hidden_states)[:, 0].
    x0 = hidden_states[:, 0, :]                     # (N, D)

    # Pre-transpose the nn.Linear weight (out, in) -> (in, out) at trace time.
    w_t = jnp.transpose(dense_w)                    # (D, D), contraction-major
    gamma2d = ln_gamma.reshape(1, D)
    beta2d = ln_beta.reshape(1, D)
    bias2d = dense_b.reshape(1, D)

    if block_n is None:
        # Whole batch in one step when it fits comfortably; otherwise tile the
        # MXU M-dim at 512 rows (multiple of 8; weight stays VMEM-resident).
        block_n = N if N <= 512 else 512
    grid = (pl.cdiv(N, block_n),)

    def param_spec(a):
        # Same block every grid step -> fetched once, stays resident in VMEM.
        return pl.BlockSpec(a.shape, lambda i: (0, 0))

    out = pl.pallas_call(
        _cross_pooler_kernel,
        out_shape=jax.ShapeDtypeStruct((N, D), hidden_states.dtype),
        grid=grid,
        in_specs=[
            pl.BlockSpec((block_n, D), lambda i: (i, 0)),   # token-0 tile
            param_spec(gamma2d),
            param_spec(beta2d),
            param_spec(w_t),
            param_spec(bias2d),
        ],
        out_specs=pl.BlockSpec((block_n, D), lambda i: (i, 0)),
        compiler_params=pltpu.CompilerParams(
            dimension_semantics=("parallel",),
            vmem_limit_bytes=64 * 1024 * 1024,
        ),
    )(x0, gamma2d, beta2d, w_t, bias2d)
    return out


def cross_pooler_reference(hidden_states, hidden_mask, ln_gamma, ln_beta,
                           dense_w, dense_b):
    """Pure-JAX reference mirroring the PyTorch module exactly
    (LayerNorm over all tokens, then take [:, 0], dense, QuickGELU)."""
    del hidden_mask
    x = hidden_states.astype(jnp.float32)
    mean = jnp.mean(x, axis=-1, keepdims=True)
    var = jnp.mean(jnp.square(x - mean), axis=-1, keepdims=True)
    xn = (x - mean) / jnp.sqrt(var + _LN_EPS) * ln_gamma + ln_beta
    pooled = xn[:, 0]
    y = pooled @ dense_w.T + dense_b
    y = y * jax.nn.sigmoid(1.702 * y)
    return y.astype(hidden_states.dtype)


if __name__ == "__main__":
    # Small but TPU-friendly shapes: batch on the sublane axis (multiple of 8),
    # hidden on the lane axis (multiple of 128).
    N, L, D = 8, 8, 128
    key = jax.random.PRNGKey(0)
    k0, k1, k2, k3, k4 = jax.random.split(key, 5)

    hidden_states = jax.random.normal(k0, (N, L, D), dtype=jnp.float32)
    hidden_mask = jnp.ones((N, L), dtype=jnp.float32)   # unused by the module

    ln_gamma = 1.0 + 0.1 * jax.random.normal(k1, (D,), jnp.float32)
    ln_beta = 0.1 * jax.random.normal(k2, (D,), jnp.float32)
    dense_w = 0.05 * jax.random.normal(k3, (D, D), jnp.float32)   # (out, in)
    dense_b = 0.05 * jax.random.normal(k4, (D,), jnp.float32)

    out = cross_pooler(hidden_states, hidden_mask, ln_gamma, ln_beta,
                       dense_w, dense_b)
    out = jax.block_until_ready(out)

    ref = cross_pooler_reference(hidden_states, hidden_mask, ln_gamma, ln_beta,
                                 dense_w, dense_b)
    assert out.shape == (N, D)
    assert jnp.allclose(out, ref, atol=1e-4, rtol=1e-4), "mismatch vs reference"
    print("KERNEL_OK")
</pallas_src>

<mosaic_0001>
module attributes {stable_mosaic.version = 11 : i64} {
  func.func @_cross_pooler_kernel(%arg0: i32, %arg1: memref<8x128xf32, #tpu.memory_space<vmem>>, %arg2: memref<1x128xf32, #tpu.memory_space<vmem>>, %arg3: memref<1x128xf32, #tpu.memory_space<vmem>>, %arg4: memref<128x128xf32, #tpu.memory_space<vmem>>, %arg5: memref<1x128xf32, #tpu.memory_space<vmem>>, %arg6: memref<8x128xf32, #tpu.memory_space<vmem>>) attributes {dimension_semantics = [#tpu.dimension_semantics<parallel>], iteration_bounds = array<i64: 1>, scalar_prefetch = 0 : i64, scratch_operands = 0 : i64, tpu.core_type = #tpu.core_type<tc>, window_params = [{transform_indices = @transform_0, window_bounds = array<i64: 8, 128>}, {pipeline_mode = #tpu.pipeline_mode<synchronous>, transform_indices = @transform_1, window_bounds = array<i64: 1, 128>}, {pipeline_mode = #tpu.pipeline_mode<synchronous>, transform_indices = @transform_2, window_bounds = array<i64: 1, 128>}, {pipeline_mode = #tpu.pipeline_mode<synchronous>, transform_indices = @transform_3, window_bounds = array<i64: 128, 128>}, {pipeline_mode = #tpu.pipeline_mode<synchronous>, transform_indices = @transform_4, window_bounds = array<i64: 1, 128>}, {transform_indices = @transform_5, window_bounds = array<i64: 8, 128>}]} {
    %c0 = arith.constant 0 : index
    %c0_0 = arith.constant 0 : index
    %0 = vector.load %arg1[%c0, %c0_0] : memref<8x128xf32, #tpu.memory_space<vmem>>, vector<8x128xf32>
    %cst = arith.constant dense<0.000000e+00> : vector<8xf32>
    %1 = vector.multi_reduction <add>, %0, %cst [1] : vector<8x128xf32> to vector<8xf32>
    %2 = vector.shape_cast %1 : vector<8xf32> to vector<8x1xf32>
    %cst_1 = arith.constant 1.280000e+02 : f32
    %3 = vector.broadcast %cst_1 : f32 to vector<8x1xf32>
    %4 = arith.divf %2, %3 : vector<8x1xf32>
    %5 = vector.broadcast %4 : vector<8x1xf32> to vector<8x128xf32>
    %6 = arith.subf %0, %5 : vector<8x128xf32>
    %7 = arith.mulf %6, %6 : vector<8x128xf32>
    %cst_2 = arith.constant dense<0.000000e+00> : vector<8xf32>
    %8 = vector.multi_reduction <add>, %7, %cst_2 [1] : vector<8x128xf32> to vector<8xf32>
    %9 = vector.shape_cast %8 : vector<8xf32> to vector<8x1xf32>
    %cst_3 = arith.constant 1.280000e+02 : f32
    %10 = vector.broadcast %cst_3 : f32 to vector<8x1xf32>
    %11 = arith.divf %9, %10 : vector<8x1xf32>
    %12 = vector.broadcast %4 : vector<8x1xf32> to vector<8x128xf32>
    %13 = arith.subf %0, %12 : vector<8x128xf32>
    %cst_4 = arith.constant 9.99999974E-6 : f32
    %14 = vector.broadcast %cst_4 : f32 to vector<8x1xf32>
    %15 = arith.addf %11, %14 : vector<8x1xf32>
    %16 = math.rsqrt %15 : vector<8x1xf32>
    %17 = vector.broadcast %16 : vector<8x1xf32> to vector<8x128xf32>
    %18 = arith.mulf %13, %17 : vector<8x128xf32>
    %c0_5 = arith.constant 0 : index
    %c0_6 = arith.constant 0 : index
    %19 = vector.load %arg2[%c0_5, %c0_6] : memref<1x128xf32, #tpu.memory_space<vmem>>, vector<1x128xf32>
    %20 = vector.broadcast %19 : vector<1x128xf32> to vector<8x128xf32>
    %21 = arith.mulf %18, %20 : vector<8x128xf32>
    %c0_7 = arith.constant 0 : index
    %c0_8 = arith.constant 0 : index
    %22 = vector.load %arg3[%c0_7, %c0_8] : memref<1x128xf32, #tpu.memory_space<vmem>>, vector<1x128xf32>
    %23 = vector.broadcast %22 : vector<1x128xf32> to vector<8x128xf32>
    %24 = arith.addf %21, %23 : vector<8x128xf32>
    %c0_9 = arith.constant 0 : index
    %c0_10 = arith.constant 0 : index
    %25 = vector.load %arg4[%c0_9, %c0_10] : memref<128x128xf32, #tpu.memory_space<vmem>>, vector<128x128xf32>
    %cst_11 = arith.constant dense<0.000000e+00> : vector<8x128xf32>
    %26 = tpu.matmul %24, %25, %cst_11 {dimension_numbers = #tpu.dot_dimension_numbers<[1], [0], [0], [1], [0, 0, 1, 1], [], []>} : vector<8x128xf32>, vector<128x128xf32>, vector<8x128xf32> -> vector<8x128xf32>
    %c0_12 = arith.constant 0 : index
    %c0_13 = arith.constant 0 : index
    %27 = vector.load %arg5[%c0_12, %c0_13] : memref<1x128xf32, #tpu.memory_space<vmem>>, vector<1x128xf32>
    %28 = vector.broadcast %27 : vector<1x128xf32> to vector<8x128xf32>
    %29 = arith.addf %26, %28 : vector<8x128xf32>
    %cst_14 = arith.constant 1.702000e+00 : f32
    %30 = vector.broadcast %cst_14 : f32 to vector<8x128xf32>
    %31 = arith.mulf %30, %29 : vector<8x128xf32>
    %32 = arith.negf %31 : vector<8x128xf32>
    %33 = math.exp %32 : vector<8x128xf32>
    %cst_15 = arith.constant 1.000000e+00 : f32
    %34 = vector.broadcast %cst_15 : f32 to vector<8x128xf32>
    %35 = arith.addf %34, %33 : vector<8x128xf32>
    %36 = arith.divf %34, %35 : vector<8x128xf32>
    %37 = arith.mulf %29, %36 : vector<8x128xf32>
    %c0_16 = arith.constant 0 : index
    %c0_17 = arith.constant 0 : index
    %38 = vector.load %arg6[%c0_16, %c0_17] : memref<8x128xf32, #tpu.memory_space<vmem>>, vector<8x128xf32>
    tpu.vector_store %arg6[%c0_16, %c0_17], %37 {strides = array<i32>} : memref<8x128xf32, #tpu.memory_space<vmem>>, vector<8x128xf32>,
    return
  }
  func.func @transform_0(%arg0: i32) -> (i32, i32) {
    %c0_i32 = arith.constant 0 : i32
    %c0_i32_0 = arith.constant 0 : i32
    return %arg0, %c0_i32 : i32, i32
  }
  func.func @transform_1(%arg0: i32) -> (i32, i32) {
    %c0_i32 = arith.constant 0 : i32
    %c0_i32_0 = arith.constant 0 : i32
    %c0_i32_1 = arith.constant 0 : i32
    return %c0_i32, %c0_i32_0 : i32, i32
  }
  func.func @transform_2(%arg0: i32) -> (i32, i32) {
    %c0_i32 = arith.constant 0 : i32
    %c0_i32_0 = arith.constant 0 : i32
    %c0_i32_1 = arith.constant 0 : i32
    return %c0_i32, %c0_i32_0 : i32, i32
  }
  func.func @transform_3(%arg0: i32) -> (i32, i32) {
    %c0_i32 = arith.constant 0 : i32
    %c0_i32_0 = arith.constant 0 : i32
    %c0_i32_1 = arith.constant 0 : i32
    return %c0_i32, %c0_i32_0 : i32, i32
  }
  func.func @transform_4(%arg0: i32) -> (i32, i32) {
    %c0_i32 = arith.constant 0 : i32
    %c0_i32_0 = arith.constant 0 : i32
    %c0_i32_1 = arith.constant 0 : i32
    return %c0_i32, %c0_i32_0 : i32, i32
  }
  func.func @transform_5(%arg0: i32) -> (i32, i32) {
    %c0_i32 = arith.constant 0 : i32
    %c0_i32_0 = arith.constant 0 : i32
    return %arg0, %c0_i32 : i32, i32
  }
}

</mosaic_0001>

<llo_original>
// kernel: tpu_custom_call.1
$region0: #{tpu_custom_call.1}
  #allocation0 [shape = 'u32[]', space=smem, size = 0x4, offset = 0x4, fixed_abs, tag = 'smem constant byte address 0x4 - core index']
  #allocation1 [shape = 'u32[144,128]{1,0:T(1,128)}', space=vmem, size = 0x12000, scoped, tag = 'internal scratch']
  %s0 = inlined_call_operand.hbm [shape: f32[8,128], index: 0, kind: input, shape index: {}]
  %s1 = inlined_call_operand.hbm [shape: f32[1,128], index: 1, kind: input, shape index: {}]
  %s2 = inlined_call_operand.hbm [shape: f32[1,128], index: 2, kind: input, shape index: {}]
  %s3 = inlined_call_operand.hbm [shape: f32[128,128], index: 3, kind: input, shape index: {}]
  %s4 = inlined_call_operand.hbm [shape: f32[1,128], index: 4, kind: input, shape index: {}]
  %s5 = inlined_call_operand.hbm [shape: f32[8,128], index: 5, kind: output, shape index: {}]
  %s6 = sld [smem:[#allocation0]]
  $region50: #{tpu_custom_call.1} parent=0
    _
  %s8 = ssub.s32 1, %s6
  %s9 = scalar_select 0, %s8, %s6
  $region1: #{tpu_custom_call.1} parent=0
    #allocation2 [shape = 'u8[4096]{0}', space=vmem, size = 0x1000, scoped, tag = 'input window, operand 0, single buffered']
    #allocation3 [shape = 's32[1]{0}', space=sflag, size = 0x4, scoped, tag = 'scoped memory for tpu_custom_call.1']
    #allocation4 [shape = 's32[1]{0}', space=sflag, size = 0x4, scoped, tag = 'scoped memory for tpu_custom_call.1']
    #allocation5 [shape = 'u8[512]{0}', space=vmem, size = 0x400, scoped, tag = 'input window, operand 1, single buffered']
    #allocation6 [shape = 's32[1]{0}', space=sflag, size = 0x4, scoped, tag = 'scoped memory for tpu_custom_call.1']
    #allocation7 [shape = 'u8[512]{0}', space=vmem, size = 0x400, scoped, tag = 'input window, operand 2, single buffered']
    #allocation8 [shape = 'u8[65536]{0}', space=vmem, size = 0x10000, scoped, tag = 'input window, operand 3, single buffered']
    #allocation9 [shape = 's32[1]{0}', space=sflag, size = 0x4, scoped, tag = 'scoped memory for tpu_custom_call.1']
    #allocation10 [shape = 'u8[512]{0}', space=vmem, size = 0x400, scoped, tag = 'input window, operand 4, single buffered']
    #allocation11 [shape = 'u8[4096]{0}', space=vmem, size = 0x1000, scoped, tag = 'output window, operand 0, single buffered']
    %10 = vsyncpa [#allocation3], 0
    %11 = vsyncpa [#allocation6], 0
    %12 = vsyncpa [#allocation9], 0
    %13 = vsyncpa [#allocation4], 0
    // Predicated region
    $region2: #{tpu_custom_call.1} parent=1 // pred_check
      _
    $region3: #{tpu_custom_call.1} parent=1 // pred_check_branch
      %15 = sbr.rel (0) target = $region5
    $region4: #{tpu_custom_call.1} parent=1 // pred_region
      %s17 = ssub.s32 128, 128
      %18 = vsyncadd [#allocation3], %s17
      %s20 = sshll.u32 [#allocation2], 4
      %s21 = int_to_ptr.vmem [resolvable:$true] %s20
      %23 = dma.hbm_to_vmem [thread:$0]  %s0, 128, %s21, [#allocation3]
    $region5: #{tpu_custom_call.1} parent=1 // pred_fallthru
      _
    // Predicated region
    $region6: #{tpu_custom_call.1} parent=1 // pred_check
      _
    $region7: #{tpu_custom_call.1} parent=1 // pred_check_branch
      %25 = sbr.rel (0) target = $region9
    $region8: #{tpu_custom_call.1} parent=1 // pred_region
      %s27 = ssub.s32 16, 16
      %28 = vsyncadd [#allocation6], %s27
      %s30 = sshll.u32 [#allocation5], 4
      %s31 = int_to_ptr.vmem [resolvable:$true] %s30
      %33 = dma.hbm_to_vmem [thread:$0]  %s1, 16, %s31, [#allocation6]
    $region9: #{tpu_custom_call.1} parent=1 // pred_fallthru
      _
    // Predicated region
    $region10: #{tpu_custom_call.1} parent=1 // pred_check
      _
    $region11: #{tpu_custom_call.1} parent=1 // pred_check_branch
      %35 = sbr.rel (0) target = $region13
    $region12: #{tpu_custom_call.1} parent=1 // pred_region
      %s37 = ssub.s32 16, 16
      %38 = vsyncadd [#allocation6], %s37
      %s40 = sshll.u32 [#allocation7], 4
      %s41 = int_to_ptr.vmem [resolvable:$true] %s40
      %43 = dma.hbm_to_vmem [thread:$0]  %s2, 16, %s41, [#allocation6]
    $region13: #{tpu_custom_call.1} parent=1 // pred_fallthru
      _
    // Predicated region
    $region14: #{tpu_custom_call.1} parent=1 // pred_check
      _
    $region15: #{tpu_custom_call.1} parent=1 // pred_check_branch
      %45 = sbr.rel (0) target = $region17
    $region16: #{tpu_custom_call.1} parent=1 // pred_region
      %s47 = ssub.s32 2048, 2048
      %48 = vsyncadd [#allocation9], %s47
      %s49 = sshll.u32 [#allocation8], 4
      %s50 = int_to_ptr.vmem [resolvable:$true] %s49
      %55 = dma.hbm_to_vmem [thread:$0]  %s3, 2048, %s50, [#allocation9], 128, 128, 8
    $region17: #{tpu_custom_call.1} parent=1 // pred_fallthru
      _
    // Predicated region
    $region18: #{tpu_custom_call.1} parent=1 // pred_check
      _
    $region19: #{tpu_custom_call.1} parent=1 // pred_check_branch
      %57 = sbr.rel (0) target = $region21
    $region20: #{tpu_custom_call.1} parent=1 // pred_region
      %s59 = ssub.s32 16, 16
      %60 = vsyncadd [#allocation9], %s59
      %s62 = sshll.u32 [#allocation10], 4
      %s63 = int_to_ptr.vmem [resolvable:$true] %s62
      %65 = dma.hbm_to_vmem [thread:$0]  %s4, 16, %s63, [#allocation9]
    $region21: #{tpu_custom_call.1} parent=1 // pred_fallthru
      _
    // Predicated region
    $region22: #{tpu_custom_call.1} parent=1 // pred_check
      _
    $region23: #{tpu_custom_call.1} parent=1 // pred_check_branch
      %67 = sbr.rel (0) target = $region25
    $region24: #{tpu_custom_call.1} parent=1 // pred_region
      %68 = dma.done [#allocation3], 128
    $region25: #{tpu_custom_call.1} parent=1 // pred_fallthru
      _
    // Predicated region
    $region26: #{tpu_custom_call.1} parent=1 // pred_check
      _
    $region27: #{tpu_custom_call.1} parent=1 // pred_check_branch
      %70 = sbr.rel (0) target = $region29
    $region28: #{tpu_custom_call.1} parent=1 // pred_region
      %71 = dma.done [#allocation6], 16
    $region29: #{tpu_custom_call.1} parent=1 // pred_fallthru
      _
    // Predicated region
    $region30: #{tpu_custom_call.1} parent=1 // pred_check
      _
    $region31: #{tpu_custom_call.1} parent=1 // pred_check_branch
      %73 = sbr.rel (0) target = $region33
    $region32: #{tpu_custom_call.1} parent=1 // pred_region
      %74 = dma.done [#allocation6], 16
    $region33: #{tpu_custom_call.1} parent=1 // pred_fallthru
      _
    // Predicated region
    $region34: #{tpu_custom_call.1} parent=1 // pred_check
      _
    $region35: #{tpu_custom_call.1} parent=1 // pred_check_branch
      %76 = sbr.rel (0) target = $region37
    $region36: #{tpu_custom_call.1} parent=1 // pred_region
      %77 = dma.done [#allocation9], 2048
    $region37: #{tpu_custom_call.1} parent=1 // pred_fallthru
      _
    // Predicated region
    $region38: #{tpu_custom_call.1} parent=1 // pred_check
      _
    $region39: #{tpu_custom_call.1} parent=1 // pred_check_branch
      %79 = sbr.rel (0) target = $region41
    $region40: #{tpu_custom_call.1} parent=1 // pred_region
      %80 = dma.done [#allocation9], 16
    $region41: #{tpu_custom_call.1} parent=1 // pred_fallthru
      _
    %v81 = vld [vmem:[#allocation2] sm:$0xff]
    %82 = vadd.xlane.f32.xlu0 %v81
    %v83 = vpop.xlane.xlu0 %82
    %v84 = vrcp.pop 128.0
    %v85 = vmul.f32 %v83, %v84
    %v86 = vsub.f32 %v81, %v85
    %v87 = vmul.f32 %v86, %v86
    %88 = vadd.xlane.f32.xlu0 %v87
    %v89 = vpop.xlane.xlu0 %88
    %v90 = vmul.f32 %v89, %v84
    %v91 = vadd.f32 %v90, 1e-05
    %v92 = vrsqrt.pop %v91
    %v93 = vmul.f32 %v86, %v92
    %v94 = vld [vmem:[#allocation5] sm:$0x1]
    %v96 = vlaneseq
    %v97 = vshrl.u32 %v96, 7
    %v98 = vsub.s32 0, %v97
    %v99 = vrot.slane %v94, %v98
    %v101 = vmul.f32 %v93, %v99
    %v102 = vld [vmem:[#allocation7] sm:$0x1]
    %v104 = vlaneseq
    %v105 = vshrl.u32 %v104, 7
    %v106 = vsub.s32 0, %v105
    %v107 = vrot.slane %v102, %v106
    %v109 = vadd.f32 %v101, %v107
    %v110 = vld [vmem:[#allocation8] sm:$0xff]
    %v111 = vld [vmem:[#allocation8 + $0x8] sm:$0xff]
    %v112 = vld [vmem:[#allocation8 + $0x10] sm:$0xff]
    %v113 = vld [vmem:[#allocation8 + $0x18] sm:$0xff]
    %v114 = vld [vmem:[#allocation8 + $0x20] sm:$0xff]
    %v115 = vld [vmem:[#allocation8 + $0x28] sm:$0xff]
    %v116 = vld [vmem:[#allocation8 + $0x30] sm:$0xff]
    %v117 = vld [vmem:[#allocation8 + $0x38] sm:$0xff]
    %v118 = vld [vmem:[#allocation8 + $0x40] sm:$0xff]
    %v119 = vld [vmem:[#allocation8 + $0x48] sm:$0xff]
    %v120 = vld [vmem:[#allocation8 + $0x50] sm:$0xff]
    %v121 = vld [vmem:[#allocation8 + $0x58] sm:$0xff]
    %v122 = vld [vmem:[#allocation8 + $0x60] sm:$0xff]
    %v123 = vld [vmem:[#allocation8 + $0x68] sm:$0xff]
    %v124 = vld [vmem:[#allocation8 + $0x70] sm:$0xff]
    %v125 = vld [vmem:[#allocation8 + $0x78] sm:$0xff]
    %v126 = vld [vmem:[#allocation10] sm:$0x1]
    %v128 = vlaneseq
    %v129 = vshrl.u32 %v128, 7
    %v130 = vsub.s32 0, %v129
    %v131 = vrot.slane %v126, %v130
    %133 = vmatprep.subr.mxu0 0.0
    %134 = vmatpush1.msra.mxu0 %v110
    %135 = vmatprep.subr.mxu0 0.0
    %136 = vmatpush1.msra.mxu0 %v111
    %137 = vmatprep.subr.mxu0 0.0
    %138 = vmatpush1.msra.mxu0 %v112
    %139 = vmatprep.subr.mxu0 0.0
    %140 = vmatpush1.msra.mxu0 %v113
    %141 = vmatprep.subr.mxu0 0.0
    %142 = vmatpush1.msra.mxu0 %v114
    %143 = vmatprep.subr.mxu0 0.0
    %144 = vmatpush1.msra.mxu0 %v115
    %145 = vmatprep.subr.mxu0 0.0
    %146 = vmatpush1.msra.mxu0 %v116
    %147 = vmatprep.subr.mxu0 0.0
    %148 = vmatpush1.msra.mxu0 %v117
    %149 = vmatprep.subr.mxu0 0.0
    %150 = vmatpush1.msra.mxu0 %v118
    %151 = vmatprep.subr.mxu0 0.0
    %152 = vmatpush1.msra.mxu0 %v119
    %153 = vmatprep.subr.mxu0 0.0
    %154 = vmatpush1.msra.mxu0 %v120
    %155 = vmatprep.subr.mxu0 0.0
    %156 = vmatpush1.msra.mxu0 %v121
    %157 = vmatprep.subr.mxu0 0.0
    %158 = vmatpush1.msra.mxu0 %v122
    %159 = vmatprep.subr.mxu0 0.0
    %160 = vmatpush1.msra.mxu0 %v123
    %161 = vmatprep.subr.mxu0 0.0
    %162 = vmatpush1.msra.mxu0 %v124
    %163 = vmatprep.subr.mxu0 0.0
    %164 = vmatpush1.msra.mxu0 %v125
    %165 = vmatprep.subr.mxu0 0.0
    %166 = vmatpush1.msra.mxu0 0.0
    %167 = vmatprep.subr.mxu0 0.0
    %168 = vmatpush1.msra.mxu0 0.0
    %169 = vmatprep.subr.mxu0 0.0
    %170 = vmatpush1.msra.mxu0 0.0
    %171 = vmatprep.subr.mxu0 0.0
    %172 = vmatpush1.msra.mxu0 0.0
    %173 = vmatprep.subr.mxu0 0.0
    %174 = vmatpush1.msra.mxu0 0.0
    %175 = vmatprep.subr.mxu0 0.0
    %176 = vmatpush1.msra.mxu0 0.0
    %177 = vmatprep.subr.mxu0 0.0
    %178 = vmatpush1.msra.mxu0 0.0
    %179 = vmatprep.subr.mxu0 0.0
    %180 = vmatpush1.msra.mxu0 0.0
    %181 = vmatprep.subr.mxu0 0.0
    %182 = vmatpush1.msra.mxu0 0.0
    %183 = vmatprep.subr.mxu0 0.0
    %184 = vmatpush1.msra.mxu0 0.0
    %185 = vmatprep.subr.mxu0 0.0
    %186 = vmatpush1.msra.mxu0 0.0
    %187 = vmatprep.subr.mxu0 0.0
    %188 = vmatpush1.msra.mxu0 0.0
    %189 = vmatprep.subr.mxu0 0.0
    %190 = vmatpush1.msra.mxu0 0.0
    %191 = vmatprep.subr.mxu0 0.0
    %192 = vmatpush1.msra.mxu0 0.0
    %193 = vmatprep.subr.mxu0 0.0
    %194 = vmatpush1.msra.mxu0 0.0
    %195 = vmatprep.subr.mxu0 0.0
    %196 = vmatpush1.msra.mxu0 0.0
    %197 = vmatprep.mubr.f32.mxu0 0.0
    %198 = vmatmul.mubr.f32.gmra.mrb[0].mxu0 %v109
    %v199 = vpop.f32.mrb[0].mxu0
    %v200 = vadd.f32 %v131, %v199
    %v201 = vpop.f32.mrb[0].mxu0
    %202 = vdwg.mxu0
    %v203 = vmul.f32 %v200, 1.702
    %v204 = vxor.u32 %v203, 2147483648
    %v205 = vmul.f32 %v204, 1.442695
    %v206 = vpow.pop %v205
    %v207 = vadd.f32 %v206, 1.0
    %v208 = vrcp.pop %v207
    %v209 = vmul.f32 1.0, %v208
    %v210 = vmul.f32 %v200, %v209
    %211 = vst [vmem:[#allocation11] sm:$0xff] %v210
    // Predicated region
    $region42: #{tpu_custom_call.1} parent=1 // pred_check
      _
    $region43: #{tpu_custom_call.1} parent=1 // pred_check_branch
      %213 = sbr.rel (0) target = $region45
    $region44: #{tpu_custom_call.1} parent=1 // pred_region
      %s215 = ssub.s32 128, 128
      %216 = vsyncadd [#allocation4], %s215
      %s218 = sshll.u32 [#allocation11], 4
      %s219 = int_to_ptr.vmem [resolvable:$true] %s218
      %221 = dma.vmem_to_hbm [thread:$0]  %s219, 128, %s5, [#allocation4]
    $region45: #{tpu_custom_call.1} parent=1 // pred_fallthru
      _
    // Predicated region
    $region46: #{tpu_custom_call.1} parent=1 // pred_check
      _
    $region47: #{tpu_custom_call.1} parent=1 // pred_check_branch
      %223 = sbr.rel (0) target = $region49
    $region48: #{tpu_custom_call.1} parent=1 // pred_region
      %224 = dma.done [#allocation4], 128
    $region49: #{tpu_custom_call.1} parent=1 // pred_fallthru
      _
    %225 = vsyncpa [#allocation3], 1
    %226 = vsyncpa [#allocation6], 1
    %227 = vsyncpa [#allocation9], 1
    %228 = vsyncpa [#allocation4], 1

</llo_original>
